<compile_context>
chip_gen: v7x
topology: tpu7x:2x2x1
jax: 0.10.0
libtpu: 0.0.40
codegen_flags: <defaults>
</compile_context>

<pallas_src>
import functools

import jax
import jax.numpy as jnp
from jax.experimental import pallas as pl
from jax.experimental.pallas import tpu as pltpu


# ----------------------------------------------------------------------------- kernel
def _downsample_linear_kernel(a_ref, w_ref, b_ref, o_ref, acc_ref, *, tb):
    """One grid step.

    a_ref:   (tb, tile_k, tile_hw)  A^T block (K on sublanes, h*w on lanes)
    w_ref:   (inner, tile_k)        weight block
    b_ref:   (inner, 1)             bias (f32)
    o_ref:   (tb, inner, tile_hw)   output block (written on the last K step)
    acc_ref: (tb, inner, tile_hw)   f32 accumulator scratch
    """
    kk = pl.program_id(2)

    @pl.when(kk == 0)
    def _init():
        acc_ref[...] = jnp.zeros_like(acc_ref)

    # Static unrolled loop over the bn sub-batch: each iteration is a clean 2-D
    # MXU matmul with the spatial h*w axis lane-dense.
    for b in range(tb):
        acc_ref[b] = acc_ref[b] + jnp.dot(
            w_ref[...], a_ref[b], preferred_element_type=jnp.float32)

    @pl.when(kk == pl.num_programs(2) - 1)
    def _finalize():
        o_ref[...] = (acc_ref[...] + b_ref[...]).astype(o_ref.dtype)


# --------------------------------------------------------------------------- tiling
def _device_vmem_capacity_bytes():
    try:
        return int(pltpu.get_tpu_info().vmem_capacity_bytes)
    except Exception:
        return 64 << 20  # conservative fallback (v7x per-TensorCore VMEM)


def _derive_tiling(BN, K, inner, hw, a_bytes, o_bytes, max_tile_hw):
    vmem_cap = _device_vmem_capacity_bytes()
    # ~45% of physical VMEM for our blocks: ~28 MiB on v7x (64 MiB physical),
    # ~56 MiB on v5e/v6e (128 MiB physical).
    budget = min(int(0.45 * vmem_cap), 56 << 20)

    # --- K tiling: the (double-buffered) weight block must fit ~1/3 of budget.
    w_budget = budget // 3

    def w_block_bytes(tk):
        # weight blocks (2 pipeline buffers) + lane-padded bias blocks
        return 2 * inner * tk * a_bytes + 2 * max(inner, 8) * 128 * 4

    tile_k = K
    if w_block_bytes(K) > w_budget:
        cands = [d for d in range(128, K, 128)
                 if K % d == 0 and w_block_bytes(d) <= w_budget]
        if not cands:
            raise ValueError(
                f"Downsample3D Pallas kernel: weight ({inner}, {K}) cannot be "
                f"tiled into the VMEM budget ({w_budget} bytes); reduce "
                f"inner_channels / in_channels*times^2 or raise the budget.")
        tile_k = max(cands)

    # --- hw tiling: A/O blocks are double-buffered + one f32 accumulator.
    col_bytes = 2 * tile_k * a_bytes + 2 * inner * o_bytes + inner * 4
    avail = max(budget - w_block_bytes(tile_k), 128 * col_bytes)
    cap = max(128, min(avail // col_bytes, max_tile_hw))
    if hw <= cap:
        tile_hw = hw                              # full-extent block: always legal
    else:
        tile_hw = max(128, (cap // 128) * 128)    # ragged edge handled by cdiv grid

    # --- bn batching: amortize ~0.35us/step overhead when the spatial extent is small.
    tb = 1
    if tile_hw == hw:
        target_cols = 2048
        tb = max(1, min(BN, target_cols // max(hw, 1), 8))
        if BN > 1:                                # keep >= 2 bn steps for v7x megacore
            tb = min(tb, (BN + 1) // 2)
        while tb > 1 and w_block_bytes(tile_k) + tb * tile_hw * col_bytes > budget:
            tb -= 1

    footprint = w_block_bytes(tile_k) + tb * tile_hw * col_bytes
    vmem_limit = max(footprint + (4 << 20), 16 << 20)
    vmem_limit = min(vmem_limit, int(0.9 * vmem_cap))
    vmem_limit = max(vmem_limit, footprint + (1 << 20))
    return tile_k, tile_hw, tb, int(vmem_limit)


# ------------------------------------------------------------------------ pallas call
def _linear_pallas(a_t, wt, b2, out_dtype, tile_k, tile_hw, tb, vmem_limit):
    BN, K, HW = a_t.shape
    inner = wt.shape[0]
    grid = (pl.cdiv(BN, tb), pl.cdiv(HW, tile_hw), K // tile_k)

    try:
        cost = pl.CostEstimate(
            flops=int(2 * BN * inner * K * HW),
            transcendentals=0,
            bytes_accessed=int(BN * K * HW * a_t.dtype.itemsize
                               + inner * K * wt.dtype.itemsize
                               + BN * inner * HW * jnp.dtype(out_dtype).itemsize))
    except Exception:
        cost = None

    kernel = functools.partial(_downsample_linear_kernel, tb=tb)
    return pl.pallas_call(
        kernel,
        out_shape=jax.ShapeDtypeStruct((BN, inner, HW), out_dtype),
        grid_spec=pltpu.PrefetchScalarGridSpec(
            num_scalar_prefetch=0,
            grid=grid,
            in_specs=[
                pl.BlockSpec((tb, tile_k, tile_hw), lambda b, j, k: (b, k, j)),
                pl.BlockSpec((inner, tile_k), lambda b, j, k: (0, k)),
                pl.BlockSpec((inner, 1), lambda b, j, k: (0, 0)),
            ],
            out_specs=pl.BlockSpec((tb, inner, tile_hw), lambda b, j, k: (b, 0, j)),
            scratch_shapes=[pltpu.VMEM((tb, inner, tile_hw), jnp.float32)],
        ),
        compiler_params=pltpu.CompilerParams(
            dimension_semantics=("parallel", "parallel", "arbitrary"),
            vmem_limit_bytes=vmem_limit,
        ),
        cost_estimate=cost,
    )(a_t, wt, b2)


# --------------------------------------------------------------------------- wrapper
def downsample3d_forward(x, weight, bias, *, times=2, compute_dtype=None,
                         out_dtype=None, max_tile_hw=8192):
    """Forward pass of Downsample3D.

    x: (B, N, C, H, W); weight: (inner, C*times*times) in PyTorch nn.Linear layout
    (columns ordered (p1, p2, c)); bias: (inner,).
    Returns (B, N, inner, H//times, W//times).
    compute_dtype: optional cast for x / weight (e.g. jnp.bfloat16) to halve HBM
    traffic of this bandwidth-bound op; default keeps x.dtype (bit-close).
    out_dtype: output dtype (default x.dtype).
    """
    assert x.ndim == 5, "The input tensor should be in 5 dims!"
    B, N, C, H, W = x.shape
    assert H % times == 0 and W % times == 0
    h, w = H // times, W // times
    hw = h * w
    inner, K = weight.shape
    assert K == C * times * times

    cdt = x.dtype if compute_dtype is None else jnp.dtype(compute_dtype)
    odt = x.dtype if out_dtype is None else jnp.dtype(out_dtype)

    # Patch rearrange 'b n c (h p1) (w p2) -> (b n) (p1 p2 c) (h w)' -> A^T layout
    # (K on sublanes, spatial h*w on lanes); one XLA transpose with the optional
    # dtype cast fused in.  See TODO(synk) at top about fusing this into the kernel.
    xr = x.astype(cdt).reshape(B, N, C, h, times, w, times)
    xr = jnp.transpose(xr, (0, 1, 4, 6, 2, 3, 5))          # (B, N, p1, p2, C, h, w)
    a_t = xr.reshape(B * N, K, hw)

    wt = weight.astype(cdt)                                # (inner, K), cols (p1 p2 c)
    b2 = bias.astype(jnp.float32).reshape(inner, 1)

    tile_k, tile_hw, tb, vmem_limit = _derive_tiling(
        B * N, K, inner, hw,
        jnp.dtype(cdt).itemsize, jnp.dtype(odt).itemsize, max_tile_hw)

    out = _linear_pallas(a_t, wt, b2, odt, tile_k, tile_hw, tb, vmem_limit)
    # The module's trailing permute(0, 1, 4, 2, 3) is already baked into the
    # kernel's (inner, h*w) output orientation; this reshape is free.
    return out.reshape(B, N, inner, h, w)


def downsample3d_reference(x, weight, bias, *, times=2):
    B, N, C, H, W = x.shape
    h, w = H // times, W // times
    xr = x.reshape(B, N, C, h, times, w, times)
    xr = jnp.transpose(xr, (0, 1, 3, 5, 4, 6, 2)).reshape(B, N, h, w, -1)
    out = jnp.einsum("bnhwk,ok->bnhwo", xr, weight) + bias
    return jnp.transpose(out, (0, 1, 4, 2, 3))


if __name__ == "__main__":
    key = jax.random.PRNGKey(0)
    k1, k2, k3 = jax.random.split(key, 3)

    B, N, C, H, W = 2, 3, 4, 16, 16
    times = 2
    inner = 32
    K = C * times * times

    x = jax.random.normal(k1, (B, N, C, H, W), dtype=jnp.float32)
    # Deterministic synthetic Linear params (PyTorch layout: (out, in) / (out,))
    weight = jax.random.normal(k2, (inner, K), dtype=jnp.float32) * 0.1
    bias = jax.random.normal(k3, (inner,), dtype=jnp.float32) * 0.1

    fwd = jax.jit(functools.partial(downsample3d_forward, times=times))
    out = jax.block_until_ready(fwd(x, weight, bias))

    ref = downsample3d_reference(x, weight, bias, times=times)
    assert out.shape == (B, N, inner, H // times, W // times), out.shape
    max_err = float(jnp.max(jnp.abs(out - ref)))
    assert max_err < 2e-2, max_err

    print("KERNEL_OK")
</pallas_src>

<mosaic_0001>
module attributes {stable_mosaic.version = 11 : i64} {
  func.func @_downsample_linear_kernel(%arg0: i32, %arg1: i32, %arg2: i32, %arg3: memref<3x16x64xf32, #tpu.memory_space<vmem>>, %arg4: memref<32x16xf32, #tpu.memory_space<vmem>>, %arg5: memref<32x1xf32, #tpu.memory_space<vmem>>, %arg6: memref<3x32x64xf32, #tpu.memory_space<vmem>>, %arg7: memref<3x32x64xf32, #tpu.memory_space<vmem>>) attributes {dimension_semantics = [#tpu.dimension_semantics<parallel>, #tpu.dimension_semantics<parallel>, #tpu.dimension_semantics<arbitrary>], iteration_bounds = array<i64: 2, 1, 1>, scalar_prefetch = 0 : i64, scratch_operands = 1 : i64, tpu.core_type = #tpu.core_type<tc>, window_params = [{transform_indices = @transform_0, window_bounds = array<i64: 3, 16, 64>}, {transform_indices = @transform_1, window_bounds = array<i64: 32, 16>}, {pipeline_mode = #tpu.pipeline_mode<synchronous>, transform_indices = @transform_2, window_bounds = array<i64: 32, 1>}, {transform_indices = @transform_3, window_bounds = array<i64: 3, 32, 64>}]} {
    %c0_i32 = arith.constant 0 : i32
    %0 = arith.cmpi eq, %arg2, %c0_i32 : i32
    %1 = arith.extui %0 : i1 to i32
    %c0_i32_0 = arith.constant 0 : i32
    %2 = arith.cmpi ne, %1, %c0_i32_0 : i32
    scf.if %2 {
      %cst_35 = arith.constant 0.000000e+00 : f32
      %36 = vector.broadcast %cst_35 : f32 to vector<3x32x64xf32>
      %c0_36 = arith.constant 0 : index
      %c0_37 = arith.constant 0 : index
      %c0_38 = arith.constant 0 : index
      %37 = vector.load %arg7[%c0_36, %c0_37, %c0_38] : memref<3x32x64xf32, #tpu.memory_space<vmem>>, vector<3x32x64xf32>
      tpu.vector_store %arg7[%c0_36, %c0_37, %c0_38], %36 {strides = array<i32>} : memref<3x32x64xf32, #tpu.memory_space<vmem>>, vector<3x32x64xf32>,
    } else {
    }
    %c0 = arith.constant 0 : index
    %c0_1 = arith.constant 0 : index
    %c0_2 = arith.constant 0 : index
    %3 = vector.load %arg7[%c0, %c0_1, %c0_2] : memref<3x32x64xf32, #tpu.memory_space<vmem>>, vector<1x32x64xf32>
    %4 = vector.shape_cast %3 : vector<1x32x64xf32> to vector<32x64xf32>
    %c0_3 = arith.constant 0 : index
    %c0_4 = arith.constant 0 : index
    %5 = vector.load %arg4[%c0_3, %c0_4] : memref<32x16xf32, #tpu.memory_space<vmem>>, vector<32x16xf32>
    %c0_5 = arith.constant 0 : index
    %c0_6 = arith.constant 0 : index
    %c0_7 = arith.constant 0 : index
    %6 = vector.load %arg3[%c0_5, %c0_6, %c0_7] : memref<3x16x64xf32, #tpu.memory_space<vmem>>, vector<1x16x64xf32>
    %7 = vector.shape_cast %6 : vector<1x16x64xf32> to vector<16x64xf32>
    %cst = arith.constant dense<0.000000e+00> : vector<32x64xf32>
    %8 = tpu.matmul %5, %7, %cst {dimension_numbers = #tpu.dot_dimension_numbers<[1], [0], [0], [1], [0, 0, 1, 1], [], []>} : vector<32x16xf32>, vector<16x64xf32>, vector<32x64xf32> -> vector<32x64xf32>
    %9 = arith.addf %4, %8 : vector<32x64xf32>
    %c0_8 = arith.constant 0 : index
    %c0_9 = arith.constant 0 : index
    %c0_10 = arith.constant 0 : index
    %10 = vector.load %arg7[%c0_8, %c0_9, %c0_10] : memref<3x32x64xf32, #tpu.memory_space<vmem>>, vector<1x32x64xf32>
    %11 = vector.shape_cast %10 : vector<1x32x64xf32> to vector<32x64xf32>
    %12 = vector.shape_cast %9 : vector<32x64xf32> to vector<1x32x64xf32>
    tpu.vector_store %arg7[%c0_8, %c0_9, %c0_10], %12 {strides = array<i32>} : memref<3x32x64xf32, #tpu.memory_space<vmem>>, vector<1x32x64xf32>,
    %c1 = arith.constant 1 : index
    %c0_11 = arith.constant 0 : index
    %c0_12 = arith.constant 0 : index
    %13 = vector.load %arg7[%c1, %c0_11, %c0_12] : memref<3x32x64xf32, #tpu.memory_space<vmem>>, vector<1x32x64xf32>
    %14 = vector.shape_cast %13 : vector<1x32x64xf32> to vector<32x64xf32>
    %c0_13 = arith.constant 0 : index
    %c0_14 = arith.constant 0 : index
    %15 = vector.load %arg4[%c0_13, %c0_14] : memref<32x16xf32, #tpu.memory_space<vmem>>, vector<32x16xf32>
    %c1_15 = arith.constant 1 : index
    %c0_16 = arith.constant 0 : index
    %c0_17 = arith.constant 0 : index
    %16 = vector.load %arg3[%c1_15, %c0_16, %c0_17] : memref<3x16x64xf32, #tpu.memory_space<vmem>>, vector<1x16x64xf32>
    %17 = vector.shape_cast %16 : vector<1x16x64xf32> to vector<16x64xf32>
    %cst_18 = arith.constant dense<0.000000e+00> : vector<32x64xf32>
    %18 = tpu.matmul %15, %17, %cst_18 {dimension_numbers = #tpu.dot_dimension_numbers<[1], [0], [0], [1], [0, 0, 1, 1], [], []>} : vector<32x16xf32>, vector<16x64xf32>, vector<32x64xf32> -> vector<32x64xf32>
    %19 = arith.addf %14, %18 : vector<32x64xf32>
    %c1_19 = arith.constant 1 : index
    %c0_20 = arith.constant 0 : index
    %c0_21 = arith.constant 0 : index
    %20 = vector.load %arg7[%c1_19, %c0_20, %c0_21] : memref<3x32x64xf32, #tpu.memory_space<vmem>>, vector<1x32x64xf32>
    %21 = vector.shape_cast %20 : vector<1x32x64xf32> to vector<32x64xf32>
    %22 = vector.shape_cast %19 : vector<32x64xf32> to vector<1x32x64xf32>
    tpu.vector_store %arg7[%c1_19, %c0_20, %c0_21], %22 {strides = array<i32>} : memref<3x32x64xf32, #tpu.memory_space<vmem>>, vector<1x32x64xf32>,
    %c2 = arith.constant 2 : index
    %c0_22 = arith.constant 0 : index
    %c0_23 = arith.constant 0 : index
    %23 = vector.load %arg7[%c2, %c0_22, %c0_23] : memref<3x32x64xf32, #tpu.memory_space<vmem>>, vector<1x32x64xf32>
    %24 = vector.shape_cast %23 : vector<1x32x64xf32> to vector<32x64xf32>
    %c0_24 = arith.constant 0 : index
    %c0_25 = arith.constant 0 : index
    %25 = vector.load %arg4[%c0_24, %c0_25] : memref<32x16xf32, #tpu.memory_space<vmem>>, vector<32x16xf32>
    %c2_26 = arith.constant 2 : index
    %c0_27 = arith.constant 0 : index
    %c0_28 = arith.constant 0 : index
    %26 = vector.load %arg3[%c2_26, %c0_27, %c0_28] : memref<3x16x64xf32, #tpu.memory_space<vmem>>, vector<1x16x64xf32>
    %27 = vector.shape_cast %26 : vector<1x16x64xf32> to vector<16x64xf32>
    %cst_29 = arith.constant dense<0.000000e+00> : vector<32x64xf32>
    %28 = tpu.matmul %25, %27, %cst_29 {dimension_numbers = #tpu.dot_dimension_numbers<[1], [0], [0], [1], [0, 0, 1, 1], [], []>} : vector<32x16xf32>, vector<16x64xf32>, vector<32x64xf32> -> vector<32x64xf32>
    %29 = arith.addf %24, %28 : vector<32x64xf32>
    %c2_30 = arith.constant 2 : index
    %c0_31 = arith.constant 0 : index
    %c0_32 = arith.constant 0 : index
    %30 = vector.load %arg7[%c2_30, %c0_31, %c0_32] : memref<3x32x64xf32, #tpu.memory_space<vmem>>, vector<1x32x64xf32>
    %31 = vector.shape_cast %30 : vector<1x32x64xf32> to vector<32x64xf32>
    %32 = vector.shape_cast %29 : vector<32x64xf32> to vector<1x32x64xf32>
    tpu.vector_store %arg7[%c2_30, %c0_31, %c0_32], %32 {strides = array<i32>} : memref<3x32x64xf32, #tpu.memory_space<vmem>>, vector<1x32x64xf32>,
    %c0_i32_33 = arith.constant 0 : i32
    %33 = arith.cmpi eq, %arg2, %c0_i32_33 : i32
    %34 = arith.extui %33 : i1 to i32
    %c0_i32_34 = arith.constant 0 : i32
    %35 = arith.cmpi ne, %34, %c0_i32_34 : i32
    scf.if %35 {
      %c0_35 = arith.constant 0 : index
      %c0_36 = arith.constant 0 : index
      %c0_37 = arith.constant 0 : index
      %36 = vector.load %arg7[%c0_35, %c0_36, %c0_37] : memref<3x32x64xf32, #tpu.memory_space<vmem>>, vector<3x32x64xf32>
      %c0_38 = arith.constant 0 : index
      %c0_39 = arith.constant 0 : index
      %37 = vector.load %arg5[%c0_38, %c0_39] : memref<32x1xf32, #tpu.memory_space<vmem>>, vector<32x1xf32>
      %38 = vector.shape_cast %37 : vector<32x1xf32> to vector<1x32x1xf32>
      %39 = vector.broadcast %38 : vector<1x32x1xf32> to vector<3x32x64xf32>
      %40 = arith.addf %36, %39 : vector<3x32x64xf32>
      %c0_40 = arith.constant 0 : index
      %c0_41 = arith.constant 0 : index
      %c0_42 = arith.constant 0 : index
      %41 = vector.load %arg6[%c0_40, %c0_41, %c0_42] : memref<3x32x64xf32, #tpu.memory_space<vmem>>, vector<3x32x64xf32>
      tpu.vector_store %arg6[%c0_40, %c0_41, %c0_42], %40 {strides = array<i32>} : memref<3x32x64xf32, #tpu.memory_space<vmem>>, vector<3x32x64xf32>,
    } else {
    }
    return
  }
  func.func @transform_0(%arg0: i32, %arg1: i32, %arg2: i32) -> (i32, i32, i32) {
    %c0_i32 = arith.constant 0 : i32
    return %arg0, %arg2, %arg1 : i32, i32, i32
  }
  func.func @transform_1(%arg0: i32, %arg1: i32, %arg2: i32) -> (i32, i32) {
    %c0_i32 = arith.constant 0 : i32
    %c0_i32_0 = arith.constant 0 : i32
    return %c0_i32, %arg2 : i32, i32
  }
  func.func @transform_2(%arg0: i32, %arg1: i32, %arg2: i32) -> (i32, i32) {
    %c0_i32 = arith.constant 0 : i32
    %c0_i32_0 = arith.constant 0 : i32
    %c0_i32_1 = arith.constant 0 : i32
    return %c0_i32, %c0_i32_0 : i32, i32
  }
  func.func @transform_3(%arg0: i32, %arg1: i32, %arg2: i32) -> (i32, i32, i32) {
    %c0_i32 = arith.constant 0 : i32
    %c0_i32_0 = arith.constant 0 : i32
    return %arg0, %c0_i32, %arg1 : i32, i32, i32
  }
}

</mosaic_0001>

<llo_original>
// kernel: downsample3d_forward.1
$region0: #{downsample3d_forward.1}
  #allocation0 [shape = 'u32[]', space=smem, size = 0x4, offset = 0x4, fixed_abs, tag = 'smem constant byte address 0x4 - core index']
  #allocation1 [shape = 'u32[144,128]{1,0:T(1,128)}', space=vmem, size = 0x12000, scoped, tag = 'internal scratch']
  #allocation2 [shape = 'f32[3,32,64]{2,1,0:T(8,128)}', space=vmem, size = 0xc000, scoped, tag = 'scratch operand']
  %s0 = inlined_call_operand.vmem [shape: f32[6,16,64], index: 0, kind: input, shape index: {}]
  %s1 = inlined_call_operand.vmem [shape: f32[32,16], index: 1, kind: input, shape index: {}]
  %s2 = inlined_call_operand.vmem [shape: f32[32,1], index: 2, kind: input, shape index: {}]
  %s3 = inlined_call_operand.vmem [shape: f32[6,32,64], index: 3, kind: output, shape index: {}]
  %s4 = sld [smem:[#allocation0]]
  $region53: #{downsample3d_forward.1} parent=0
    _
  %s6 = ssub.s32 1, %s4
  %s7 = scalar_select 0, %s6, %s4
  loop: start=0, step=1, limit=4
  $region2: #{downsample3d_forward.1} parent=0 // loop_pre_header
    _
  $region3: #{downsample3d_forward.1} parent=0 // loop_header
    %s9 = sphi 0, %s13
    %p10 = scmp.ge.s32.totalorder %s9, 4
    %s16 = sphi 0, %s35
    %s17 = sphi 0, %s31
    %s18 = sphi 0, %s27
    %s19 = sphi 0, %s16
    %s20 = sphi 0, %s17
    %s21 = sphi 0, %s18
    %s22 = sphi 0, %s19
    %s23 = sphi 0, %s20
    %s24 = sphi 0, %s21
    %s42 = sphi 0, %s44
    %s45 = sphi 0, %s42
    %s46 = sphi 0, %s45
    %s62 = sphi 0, %s46
    %s68 = sphi 0, %s70
    %s71 = sphi 0, %s68
    %s72 = sphi 0, %s71
    %s88 = sphi 0, %s72
    %s92 = sphi 0, %s92
    %s94 = sphi 0, %s92
    %s95 = sphi 0, %s94
    %s109 = sphi 0, %s95
    %s117 = sphi 0, %s119
    %s120 = sphi 0, %s117
    %s121 = sphi 0, %s120
    %s137 = sphi 0, %s121
  $region4: #{downsample3d_forward.1} parent=0 // loop_header_branch
    %12 = sbr.rel (%p10) target = $region8
  $region5: #{downsample3d_forward.1} parent=0 // loop_body
    %s14 = ssub.s32 %s9, 1
    %s15 = ssub.s32 %s9, 2
    %s25 = sadd.s32 1, %s18
    %p26 = scmp.ge.s32.totalorder %s25, 1
    %s27 = scalar_select %p26, 0, %s25
    %s28 = sadd.s32 1, %s17
    %s29 = scalar_select %p26, %s28, %s17
    %p30 = scmp.ge.s32.totalorder %s29, 1
    %s31 = scalar_select %p30, 0, %s29
    %s32 = sadd.s32 1, %s16
    %s33 = scalar_select %p30, %s32, %s16
    %p34 = scmp.ge.s32.totalorder %s33, 2
    %s35 = scalar_select %p34, 0, %s33
    %s36 = ssub.s32 %s16, %s35
    %s37 = ssub.s32 %s18, %s27
    %s38 = sor.u32 %s36, %s37
    %s39 = ssub.s32 %s17, %s31
    %s40 = sor.u32 %s38, %s39
    %p41 = scmp.eq.s32.totalorder %s40, 0
    %s43 = sadd.s32 %s42, 1
    %s44 = scalar_select %p41, %s42, %s43
    %p47 = pneg %p41
    %p48 = scmp.eq.s32.totalorder %s9, 1
    %p49 = por %p47, %p48
    %p50 = scmp.ne.s32.totalorder %s42, %s45
    %p51 = scmp.eq.s32.totalorder %s9, 0
    %p52 = por %p50, %p51
    %p53 = scmp.ne.s32.totalorder %s42, %s45
    %p54 = scmp.eq.s32.totalorder %s14, 1
    %p55 = por %p53, %p54
    %p56 = scmp.ne.s32.totalorder %s45, %s46
    %p57 = scmp.eq.s32.totalorder %s14, 0
    %p58 = por %p56, %p57
    %p59 = scmp.ne.s32.totalorder %s45, %s46
    %p60 = scmp.eq.s32.totalorder %s15, 1
    %p61 = por %p59, %p60
    %p63 = scmp.ne.s32.totalorder %s46, %s62
    %p64 = scmp.eq.s32.totalorder %s15, 0
    %p65 = por %p63, %p64
    %s66 = ssub.s32 %s18, %s27
    %p67 = scmp.eq.s32.totalorder %s66, 0
    %s69 = sadd.s32 %s68, 1
    %s70 = scalar_select %p67, %s68, %s69
    %p73 = pneg %p67
    %p74 = scmp.eq.s32.totalorder %s9, 1
    %p75 = por %p73, %p74
    %p76 = scmp.ne.s32.totalorder %s68, %s71
    %p77 = scmp.eq.s32.totalorder %s9, 0
    %p78 = por %p76, %p77
    %p79 = scmp.ne.s32.totalorder %s68, %s71
    %p80 = scmp.eq.s32.totalorder %s14, 1
    %p81 = por %p79, %p80
    %p82 = scmp.ne.s32.totalorder %s71, %s72
    %p83 = scmp.eq.s32.totalorder %s14, 0
    %p84 = por %p82, %p83
    %p85 = scmp.ne.s32.totalorder %s71, %s72
    %p86 = scmp.eq.s32.totalorder %s15, 1
    %p87 = por %p85, %p86
    %p89 = scmp.ne.s32.totalorder %s72, %s88
    %p90 = scmp.eq.s32.totalorder %s15, 0
    %p91 = por %p89, %p90
    %s93 = sadd.s32 %s92, 1
    %p96 = scmp.eq.s32.totalorder %s9, 1
    %p97 = scmp.ne.s32.totalorder %s92, %s94
    %p98 = scmp.eq.s32.totalorder %s9, 0
    %p99 = por %p97, %p98
    %p100 = scmp.ne.s32.totalorder %s92, %s94
    %p101 = scmp.eq.s32.totalorder %s14, 1
    %p102 = por %p100, %p101
    %p103 = scmp.ne.s32.totalorder %s94, %s95
    %p104 = scmp.eq.s32.totalorder %s14, 0
    %p105 = por %p103, %p104
    %p106 = scmp.ne.s32.totalorder %s94, %s95
    %p107 = scmp.eq.s32.totalorder %s15, 1
    %p108 = por %p106, %p107
    %p110 = scmp.ne.s32.totalorder %s95, %s109
    %p111 = scmp.eq.s32.totalorder %s15, 0
    %p112 = por %p110, %p111
    %s113 = ssub.s32 %s16, %s35
    %s114 = ssub.s32 %s17, %s31
    %s115 = sor.u32 %s113, %s114
    %p116 = scmp.eq.s32.totalorder %s115, 0
    %s118 = sadd.s32 %s117, 1
    %s119 = scalar_select %p116, %s117, %s118
    %p122 = pneg %p116
    %p123 = scmp.eq.s32.totalorder %s9, 1
    %p124 = por %p122, %p123
    %p125 = scmp.ne.s32.totalorder %s117, %s120
    %p126 = scmp.eq.s32.totalorder %s9, 0
    %p127 = por %p125, %p126
    %p128 = scmp.ne.s32.totalorder %s117, %s120
    %p129 = scmp.eq.s32.totalorder %s14, 1
    %p130 = por %p128, %p129
    %p131 = scmp.ne.s32.totalorder %s120, %s121
    %p132 = scmp.eq.s32.totalorder %s14, 0
    %p133 = por %p131, %p132
    %p134 = scmp.ne.s32.totalorder %s120, %s121
    %p135 = scmp.eq.s32.totalorder %s15, 1
    %p136 = por %p134, %p135
    %p138 = scmp.ne.s32.totalorder %s121, %s137
    %p139 = scmp.eq.s32.totalorder %s15, 0
    %p140 = por %p138, %p139
    %p141 = scmp.le.s32.totalorder 1, %s9
    %p142 = scmp.lt.s32.totalorder %s9, 3
    %p143 = pnand %p141, %p142
    %p144 = pneg %p143
    // Predicated region
    $region9: #{downsample3d_forward.1} parent=5 // pred_check
      _
    $region10: #{downsample3d_forward.1} parent=5 // pred_check_branch
      %146 = sbr.rel (%p143) target = $region12
    $region11: #{downsample3d_forward.1} parent=5 // pred_region
      %s147 = ssub.s32 %s9, 1
      // Predicated region
      $region13: #{downsample3d_forward.1} parent=11 // pred_check
        %p148 = pneg %p84
      $region14: #{downsample3d_forward.1} parent=11 // pred_check_branch
        %150 = sbr.rel (%p148) target = $region16
      $region15: #{downsample3d_forward.1} parent=11 // pred_region
        %p151 = scmp.lt.s32.totalorder %s21, 0
        %s152 = scalar_select %p151, %s21, 0
        %s153 = smul.addr %s152, 8
        %s154 = scalar_lea.vmem %s1, %s153
      $region16: #{downsample3d_forward.1} parent=11 // pred_fallthru
        _
      // Predicated region
      $region17: #{downsample3d_forward.1} parent=11 // pred_check
        %p155 = pneg %p105
      $region18: #{downsample3d_forward.1} parent=11 // pred_check_branch
        %157 = sbr.rel (%p155) target = $region20
      $region19: #{downsample3d_forward.1} parent=11 // pred_region
        _
      $region20: #{downsample3d_forward.1} parent=11 // pred_fallthru
        _
    $region12: #{downsample3d_forward.1} parent=5 // pred_fallthru
      _
    %p158 = scmp.lt.s32.totalorder %s9, 2
    // Predicated region
    $region21: #{downsample3d_forward.1} parent=5 // pred_check
      %p159 = pneg %p158
    $region22: #{downsample3d_forward.1} parent=5 // pred_check_branch
      %161 = sbr.rel (%p159) target = $region24
    $region23: #{downsample3d_forward.1} parent=5 // pred_region
      // Predicated region
      $region25: #{downsample3d_forward.1} parent=23 // pred_check
        %p162 = pneg %p52
      $region26: #{downsample3d_forward.1} parent=23 // pred_check_branch
        %164 = sbr.rel (%p162) target = $region28
      $region27: #{downsample3d_forward.1} parent=23 // pred_region
        %s165 = smul.u32 3, %s16
        %s166 = smul.u32 2, %s18
        %p167 = scmp.lt.s32.totalorder %s165, 5
        %s168 = scalar_select %p167, %s165, 5
        %p169 = scmp.lt.s32.totalorder %s166, 1
        %s170 = scalar_select %p169, %s166, 1
        %p171 = scmp.lt.s32.totalorder %s17, 0
        %s172 = scalar_select %p171, %s17, 0
        %s173 = sadd.s32 %s172, %s170
        %s174 = smul.addr %s168, 2
        %s175 = sadd.s32 %s173, %s174
        %s176 = smul.addr %s175, 8
        %s177 = scalar_lea.vmem %s0, %s176
        %s178 = smul.u32 3, %s16
        %s179 = smul.u32 2, %s18
      $region28: #{downsample3d_forward.1} parent=23 // pred_fallthru
        _
    $region24: #{downsample3d_forward.1} parent=5 // pred_fallthru
      _
    %p180 = scmp.le.s32.totalorder 1, %s9
    %p181 = scmp.lt.s32.totalorder %s9, 3
    %p182 = pnand %p180, %p181
    %p183 = pneg %p182
    // Predicated region
    $region29: #{downsample3d_forward.1} parent=5 // pred_check
      _
    $region30: #{downsample3d_forward.1} parent=5 // pred_check_branch
      %185 = sbr.rel (%p182) target = $region32
    $region31: #{downsample3d_forward.1} parent=5 // pred_region
      %s186 = ssub.s32 %s9, 1
      %s187 = smul.u32 3, %s19
      %s188 = smul.u32 2, %s21
      %p189 = scmp.lt.s32.totalorder %s187, 5
      %s190 = scalar_select %p189, %s187, 5
      %p191 = scmp.lt.s32.totalorder %s188, 1
      %s192 = scalar_select %p191, %s188, 1
      %p193 = scmp.lt.s32.totalorder %s20, 0
      %s194 = scalar_select %p193, %s20, 0
      %s195 = sadd.s32 %s194, %s192
      %s196 = smul.addr %s190, 2
      %s197 = sadd.s32 %s195, %s196
      %s198 = smul.addr %s197, 8
      %s199 = scalar_lea.vmem %s0, %s198
      %p200 = pneg %p58
      %p201 = pneg %p55
      %p202 = scmp.lt.s32.totalorder %s21, 0
      %s203 = scalar_select %p202, %s21, 0
      %s204 = smul.addr %s203, 8
      %s205 = scalar_lea.vmem %s1, %s204
      %p206 = pneg %p84
      %p207 = pneg %p81
      %p208 = pneg %p105
      %p209 = pneg %p102
      %p210 = pneg %p133
      %p211 = pneg %p130
      %s212 = smul.u32 3, %s19
      %p213 = scmp.lt.s32.totalorder %s212, 5
      %s214 = scalar_select %p213, %s212, 5
      %p215 = scmp.lt.s32.totalorder %s20, 0
      %s216 = scalar_select %p215, %s20, 0
      %s217 = smul.addr %s214, 4
      %s218 = sadd.s32 %s216, %s217
      %s219 = smul.addr %s218, 8
      %s220 = scalar_lea.vmem %s3, %s219
      %s221 = smul.u32 3, %s19
      %s222 = smul.u32 2, %s21
      %p223 = scmp.lt.s32.totalorder %s221, 5
      %s224 = scalar_select %p223, %s221, 5
      %p225 = scmp.lt.s32.totalorder %s222, 1
      %s226 = scalar_select %p225, %s222, 1
      %p227 = scmp.lt.s32.totalorder %s20, 0
      %s228 = scalar_select %p227, %s20, 0
      %s229 = sadd.s32 %s228, %s226
      %s230 = smul.addr %s224, 2
      %s231 = sadd.s32 %s229, %s230
      %s232 = smul.addr %s231, 8
      %s233 = scalar_lea.vmem %s0, %s232
      %s234 = smul.u32 3, %s19
      %s235 = smul.u32 2, %s21
      %p236 = scmp.lt.s32.totalorder %s21, 0
      %s237 = scalar_select %p236, %s21, 0
      %s238 = smul.addr %s237, 8
      %s239 = scalar_lea.vmem %s1, %s238
      %s240 = smul.u32 3, %s19
      %p241 = scmp.lt.s32.totalorder %s240, 5
      %s242 = scalar_select %p241, %s240, 5
      %p243 = scmp.lt.s32.totalorder %s20, 0
      %s244 = scalar_select %p243, %s20, 0
      %s245 = smul.addr %s242, 4
      %s246 = sadd.s32 %s244, %s245
      %s247 = smul.addr %s246, 8
      %s248 = scalar_lea.vmem %s3, %s247
      %s249 = smul.u32 3, %s19
      %p250 = scmp.eq.s32.totalorder %s21, 0
      // Predicated region
      $region33: #{downsample3d_forward.1} parent=31 // pred_check
        %p251 = pneg %p250
      $region34: #{downsample3d_forward.1} parent=31 // pred_check_branch
        %253 = sbr.rel (%p251) target = $region36
      $region35: #{downsample3d_forward.1} parent=31 // pred_region
        %vm254 = vcmask 523264
        %255 = vst.msk [vmem:[#allocation2] sm:$0xff] %vm254, 0.0
        %256 = vst.msk [vmem:[#allocation2 + $0x8] sm:$0xff] %vm254, 0.0
        %257 = vst.msk [vmem:[#allocation2 + $0x10] sm:$0xff] %vm254, 0.0
        %258 = vst.msk [vmem:[#allocation2 + $0x18] sm:$0xff] %vm254, 0.0
        %259 = vst.msk [vmem:[#allocation2 + $0x20] sm:$0xff] %vm254, 0.0
        %260 = vst.msk [vmem:[#allocation2 + $0x28] sm:$0xff] %vm254, 0.0
        %261 = vst.msk [vmem:[#allocation2 + $0x30] sm:$0xff] %vm254, 0.0
        %262 = vst.msk [vmem:[#allocation2 + $0x38] sm:$0xff] %vm254, 0.0
        %263 = vst.msk [vmem:[#allocation2 + $0x40] sm:$0xff] %vm254, 0.0
        %264 = vst.msk [vmem:[#allocation2 + $0x48] sm:$0xff] %vm254, 0.0
        %265 = vst.msk [vmem:[#allocation2 + $0x50] sm:$0xff] %vm254, 0.0
        %266 = vst.msk [vmem:[#allocation2 + $0x58] sm:$0xff] %vm254, 0.0
      $region36: #{downsample3d_forward.1} parent=31 // pred_fallthru
        _
      %v267 = vld [vmem:[#allocation2] sm:$0xff]
      %v268 = vld [vmem:[#allocation2 + $0x8] sm:$0xff]
      %v269 = vld [vmem:[#allocation2 + $0x10] sm:$0xff]
      %v270 = vld [vmem:[#allocation2 + $0x18] sm:$0xff]
      %v271 = vld [vmem:[%s239] sm:$0xff]
      %v272 = vld [vmem:[%s239 + $0x8] sm:$0xff]
      %v273 = vld [vmem:[%s239 + $0x10] sm:$0xff]
      %v274 = vld [vmem:[%s239 + $0x18] sm:$0xff]
      %v275 = vld [vmem:[%s233] sm:$0xff]
      %v276 = vld [vmem:[%s233 + $0x8] sm:$0xff]
      %vm277 = vcmask 130048
      %v279 = vsel %vm277, %v271, 0
      %v282 = vsel %vm277, %v272, 0
      %v285 = vsel %vm277, %v273, 0
      %v288 = vsel %vm277, %v274, 0
      %290 = vmatprep.subr.mxu0 0.0
      %291 = vmatpush1.msra.mxu0 %v275
      %292 = vmatprep.subr.mxu0 0.0
      %293 = vmatpush1.msra.mxu0 %v276
      %294 = vmatprep.subr.mxu0 0.0
      %295 = vmatpush1.msra.mxu0 0.0
      %296 = vmatprep.subr.mxu0 0.0
      %297 = vmatpush1.msra.mxu0 0.0
      %298 = vmatprep.subr.mxu0 0.0
      %299 = vmatpush1.msra.mxu0 0.0
      %300 = vmatprep.subr.mxu0 0.0
      %301 = vmatpush1.msra.mxu0 0.0
      %302 = vmatprep.subr.mxu0 0.0
      %303 = vmatpush1.msra.mxu0 0.0
      %304 = vmatprep.subr.mxu0 0.0
      %305 = vmatpush1.msra.mxu0 0.0
      %306 = vmatprep.subr.mxu0 0.0
      %307 = vmatpush1.msra.mxu0 0.0
      %308 = vmatprep.subr.mxu0 0.0
      %309 = vmatpush1.msra.mxu0 0.0
      %310 = vmatprep.subr.mxu0 0.0
      %311 = vmatpush1.msra.mxu0 0.0
      %312 = vmatprep.subr.mxu0 0.0
      %313 = vmatpush1.msra.mxu0 0.0
      %314 = vmatprep.subr.mxu0 0.0
      %315 = vmatpush1.msra.mxu0 0.0
      %316 = vmatprep.subr.mxu0 0.0
      %317 = vmatpush1.msra.mxu0 0.0
      %318 = vmatprep.subr.mxu0 0.0
      %319 = vmatpush1.msra.mxu0 0.0
      %320 = vmatprep.subr.mxu0 0.0
      %321 = vmatpush1.msra.mxu0 0.0
      %322 = vmatprep.subr.mxu0 0.0
      %323 = vmatpush1.msra.mxu0 0.0
      %324 = vmatprep.subr.mxu0 0.0
      %325 = vmatpush1.msra.mxu0 0.0
      %326 = vmatprep.subr.mxu0 0.0
      %327 = vmatpush1.msra.mxu0 0.0
      %328 = vmatprep.subr.mxu0 0.0
      %329 = vmatpush1.msra.mxu0 0.0
      %330 = vmatprep.subr.mxu0 0.0
      %331 = vmatpush1.msra.mxu0 0.0
      %332 = vmatprep.subr.mxu0 0.0
      %333 = vmatpush1.msra.mxu0 0.0
      %334 = vmatprep.subr.mxu0 0.0
      %335 = vmatpush1.msra.mxu0 0.0
      %336 = vmatprep.subr.mxu0 0.0
      %337 = vmatpush1.msra.mxu0 0.0
      %338 = vmatprep.subr.mxu0 0.0
      %339 = vmatpush1.msra.mxu0 0.0
      %340 = vmatprep.subr.mxu0 0.0
      %341 = vmatpush1.msra.mxu0 0.0
      %342 = vmatprep.subr.mxu0 0.0
      %343 = vmatpush1.msra.mxu0 0.0
      %344 = vmatprep.subr.mxu0 0.0
      %345 = vmatpush1.msra.mxu0 0.0
      %346 = vmatprep.subr.mxu0 0.0
      %347 = vmatpush1.msra.mxu0 0.0
      %348 = vmatprep.subr.mxu0 0.0
      %349 = vmatpush1.msra.mxu0 0.0
      %350 = vmatprep.subr.mxu0 0.0
      %351 = vmatpush1.msra.mxu0 0.0
      %352 = vmatprep.subr.mxu0 0.0
      %353 = vmatpush1.msra.mxu0 0.0
      %354 = vmatprep.mubr.f32.mxu0 0.0
      %355 = vmatmul.mubr.f32.gmra.mrb[0].mxu0 %v279
      %v356 = vpop.f32.mrb[0].mxu0
      %v357 = vadd.f32 0.0, %v356
      %v358 = vpop.f32.mrb[0].mxu0
      %359 = vmatprep.mubr.f32.mxu0 0.0
      %360 = vmatmul.mubr.f32.gmra.mrb[0].mxu0 %v282
      %v361 = vpop.f32.mrb[0].mxu0
      %v362 = vadd.f32 0.0, %v361
      %v363 = vpop.f32.mrb[0].mxu0
      %364 = vmatprep.mubr.f32.mxu0 0.0
      %365 = vmatmul.mubr.f32.gmra.mrb[0].mxu0 %v285
      %v366 = vpop.f32.mrb[0].mxu0
      %v367 = vadd.f32 0.0, %v366
      %v368 = vpop.f32.mrb[0].mxu0
      %369 = vmatprep.mubr.f32.mxu0 0.0
      %370 = vmatmul.mubr.f32.gmra.mrb[0].mxu0 %v288
      %v371 = vpop.f32.mrb[0].mxu0
      %v372 = vadd.f32 0.0, %v371
      %v373 = vpop.f32.mrb[0].mxu0
      %374 = vdwg.mxu0
      %v375 = vadd.f32 %v267, %v357
      %v376 = vadd.f32 %v268, %v362
      %v377 = vadd.f32 %v269, %v367
      %v378 = vadd.f32 %v270, %v372
      %vm379 = vcmask 523264
      %380 = vst.msk [vmem:[#allocation2] sm:$0xff] %vm379, %v375
      %381 = vst.msk [vmem:[#allocation2 + $0x8] sm:$0xff] %vm379, %v376
      %382 = vst.msk [vmem:[#allocation2 + $0x10] sm:$0xff] %vm379, %v377
      %383 = vst.msk [vmem:[#allocation2 + $0x18] sm:$0xff] %vm379, %v378
      %s384 = scalar_lea.vmem [#allocation2], 32
      %v385 = vld [vmem:[%s384] sm:$0xff]
      %v386 = vld [vmem:[%s384 + $0x8] sm:$0xff]
      %v387 = vld [vmem:[%s384 + $0x10] sm:$0xff]
      %v388 = vld [vmem:[%s384 + $0x18] sm:$0xff]
      %v389 = vld [vmem:[%s239] sm:$0xff]
      %v390 = vld [vmem:[%s239 + $0x8] sm:$0xff]
      %v391 = vld [vmem:[%s239 + $0x10] sm:$0xff]
      %v392 = vld [vmem:[%s239 + $0x18] sm:$0xff]
      %s393 = scalar_lea.vmem %s233, 16
      %v394 = vld [vmem:[%s393] sm:$0xff]
      %v395 = vld [vmem:[%s393 + $0x8] sm:$0xff]
      %v397 = vsel %vm277, %v389, 0
      %v400 = vsel %vm277, %v390, 0
      %v403 = vsel %vm277, %v391, 0
      %v406 = vsel %vm277, %v392, 0
      %408 = vmatprep.subr.mxu0 0.0
      %409 = vmatpush1.msra.mxu0 %v394
      %410 = vmatprep.subr.mxu0 0.0
      %411 = vmatpush1.msra.mxu0 %v395
      %412 = vmatprep.subr.mxu0 0.0
      %413 = vmatpush1.msra.mxu0 0.0
      %414 = vmatprep.subr.mxu0 0.0
      %415 = vmatpush1.msra.mxu0 0.0
      %416 = vmatprep.subr.mxu0 0.0
      %417 = vmatpush1.msra.mxu0 0.0
      %418 = vmatprep.subr.mxu0 0.0
      %419 = vmatpush1.msra.mxu0 0.0
      %420 = vmatprep.subr.mxu0 0.0
      %421 = vmatpush1.msra.mxu0 0.0
      %422 = vmatprep.subr.mxu0 0.0
      %423 = vmatpush1.msra.mxu0 0.0
      %424 = vmatprep.subr.mxu0 0.0
      %425 = vmatpush1.msra.mxu0 0.0
      %426 = vmatprep.subr.mxu0 0.0
      %427 = vmatpush1.msra.mxu0 0.0
      %428 = vmatprep.subr.mxu0 0.0
      %429 = vmatpush1.msra.mxu0 0.0
      %430 = vmatprep.subr.mxu0 0.0
      %431 = vmatpush1.msra.mxu0 0.0
      %432 = vmatprep.subr.mxu0 0.0
      %433 = vmatpush1.msra.mxu0 0.0
      %434 = vmatprep.subr.mxu0 0.0
      %435 = vmatpush1.msra.mxu0 0.0
      %436 = vmatprep.subr.mxu0 0.0
      %437 = vmatpush1.msra.mxu0 0.0
      %438 = vmatprep.subr.mxu0 0.0
      %439 = vmatpush1.msra.mxu0 0.0
      %440 = vmatprep.subr.mxu0 0.0
      %441 = vmatpush1.msra.mxu0 0.0
      %442 = vmatprep.subr.mxu0 0.0
      %443 = vmatpush1.msra.mxu0 0.0
      %444 = vmatprep.subr.mxu0 0.0
      %445 = vmatpush1.msra.mxu0 0.0
      %446 = vmatprep.subr.mxu0 0.0
      %447 = vmatpush1.msra.mxu0 0.0
      %448 = vmatprep.subr.mxu0 0.0
      %449 = vmatpush1.msra.mxu0 0.0
      %450 = vmatprep.subr.mxu0 0.0
      %451 = vmatpush1.msra.mxu0 0.0
      %452 = vmatprep.subr.mxu0 0.0
      %453 = vmatpush1.msra.mxu0 0.0
      %454 = vmatprep.subr.mxu0 0.0
      %455 = vmatpush1.msra.mxu0 0.0
      %456 = vmatprep.subr.mxu0 0.0
      %457 = vmatpush1.msra.mxu0 0.0
      %458 = vmatprep.subr.mxu0 0.0
      %459 = vmatpush1.msra.mxu0 0.0
      %460 = vmatprep.subr.mxu0 0.0
      %461 = vmatpush1.msra.mxu0 0.0
      %462 = vmatprep.subr.mxu0 0.0
      %463 = vmatpush1.msra.mxu0 0.0
      %464 = vmatprep.subr.mxu0 0.0
      %465 = vmatpush1.msra.mxu0 0.0
      %466 = vmatprep.subr.mxu0 0.0
      %467 = vmatpush1.msra.mxu0 0.0
      %468 = vmatprep.subr.mxu0 0.0
      %469 = vmatpush1.msra.mxu0 0.0
      %470 = vmatprep.subr.mxu0 0.0
      %471 = vmatpush1.msra.mxu0 0.0
      %472 = vmatprep.mubr.f32.mxu0 0.0
      %473 = vmatmul.mubr.f32.gmra.mrb[0].mxu0 %v397
      %v474 = vpop.f32.mrb[0].mxu0
      %v475 = vadd.f32 0.0, %v474
      %v476 = vpop.f32.mrb[0].mxu0
      %477 = vmatprep.mubr.f32.mxu0 0.0
      %478 = vmatmul.mubr.f32.gmra.mrb[0].mxu0 %v400
      %v479 = vpop.f32.mrb[0].mxu0
      %v480 = vadd.f32 0.0, %v479
      %v481 = vpop.f32.mrb[0].mxu0
      %482 = vmatprep.mubr.f32.mxu0 0.0
      %483 = vmatmul.mubr.f32.gmra.mrb[0].mxu0 %v403
      %v484 = vpop.f32.mrb[0].mxu0
      %v485 = vadd.f32 0.0, %v484
      %v486 = vpop.f32.mrb[0].mxu0
      %487 = vmatprep.mubr.f32.mxu0 0.0
      %488 = vmatmul.mubr.f32.gmra.mrb[0].mxu0 %v406
      %v489 = vpop.f32.mrb[0].mxu0
      %v490 = vadd.f32 0.0, %v489
      %v491 = vpop.f32.mrb[0].mxu0
      %492 = vdwg.mxu0
      %v493 = vadd.f32 %v385, %v475
      %v494 = vadd.f32 %v386, %v480
      %v495 = vadd.f32 %v387, %v485
      %v496 = vadd.f32 %v388, %v490
      %497 = vst.msk [vmem:[%s384] sm:$0xff] %vm379, %v493
      %498 = vst.msk [vmem:[%s384 + $0x8] sm:$0xff] %vm379, %v494
      %499 = vst.msk [vmem:[%s384 + $0x10] sm:$0xff] %vm379, %v495
      %500 = vst.msk [vmem:[%s384 + $0x18] sm:$0xff] %vm379, %v496
      %s501 = scalar_lea.vmem [#allocation2], 64
      %v502 = vld [vmem:[%s501] sm:$0xff]
      %v503 = vld [vmem:[%s501 + $0x8] sm:$0xff]
      %v504 = vld [vmem:[%s501 + $0x10] sm:$0xff]
      %v505 = vld [vmem:[%s501 + $0x18] sm:$0xff]
      %v506 = vld [vmem:[%s239] sm:$0xff]
      %v507 = vld [vmem:[%s239 + $0x8] sm:$0xff]
      %v508 = vld [vmem:[%s239 + $0x10] sm:$0xff]
      %v509 = vld [vmem:[%s239 + $0x18] sm:$0xff]
      %s510 = scalar_lea.vmem %s233, 32
      %v511 = vld [vmem:[%s510] sm:$0xff]
      %v512 = vld [vmem:[%s510 + $0x8] sm:$0xff]
      %v514 = vsel %vm277, %v506, 0
      %v517 = vsel %vm277, %v507, 0
      %v520 = vsel %vm277, %v508, 0
      %v523 = vsel %vm277, %v509, 0
      %525 = vmatprep.subr.mxu0 0.0
      %526 = vmatpush1.msra.mxu0 %v511
      %527 = vmatprep.subr.mxu0 0.0
      %528 = vmatpush1.msra.mxu0 %v512
      %529 = vmatprep.subr.mxu0 0.0
      %530 = vmatpush1.msra.mxu0 0.0
      %531 = vmatprep.subr.mxu0 0.0
      %532 = vmatpush1.msra.mxu0 0.0
      %533 = vmatprep.subr.mxu0 0.0
      %534 = vmatpush1.msra.mxu0 0.0
      %535 = vmatprep.subr.mxu0 0.0
      %536 = vmatpush1.msra.mxu0 0.0
      %537 = vmatprep.subr.mxu0 0.0
      %538 = vmatpush1.msra.mxu0 0.0
      %539 = vmatprep.subr.mxu0 0.0
      %540 = vmatpush1.msra.mxu0 0.0
      %541 = vmatprep.subr.mxu0 0.0
      %542 = vmatpush1.msra.mxu0 0.0
      %543 = vmatprep.subr.mxu0 0.0
      %544 = vmatpush1.msra.mxu0 0.0
      %545 = vmatprep.subr.mxu0 0.0
      %546 = vmatpush1.msra.mxu0 0.0
      %547 = vmatprep.subr.mxu0 0.0
      %548 = vmatpush1.msra.mxu0 0.0
      %549 = vmatprep.subr.mxu0 0.0
      %550 = vmatpush1.msra.mxu0 0.0
      %551 = vmatprep.subr.mxu0 0.0
      %552 = vmatpush1.msra.mxu0 0.0
      %553 = vmatprep.subr.mxu0 0.0
      %554 = vmatpush1.msra.mxu0 0.0
      %555 = vmatprep.subr.mxu0 0.0
      %556 = vmatpush1.msra.mxu0 0.0
      %557 = vmatprep.subr.mxu0 0.0
      %558 = vmatpush1.msra.mxu0 0.0
      %559 = vmatprep.subr.mxu0 0.0
      %560 = vmatpush1.msra.mxu0 0.0
      %561 = vmatprep.subr.mxu0 0.0
      %562 = vmatpush1.msra.mxu0 0.0
      %563 = vmatprep.subr.mxu0 0.0
      %564 = vmatpush1.msra.mxu0 0.0
      %565 = vmatprep.subr.mxu0 0.0
      %566 = vmatpush1.msra.mxu0 0.0
      %567 = vmatprep.subr.mxu0 0.0
      %568 = vmatpush1.msra.mxu0 0.0
      %569 = vmatprep.subr.mxu0 0.0
      %570 = vmatpush1.msra.mxu0 0.0
      %571 = vmatprep.subr.mxu0 0.0
      %572 = vmatpush1.msra.mxu0 0.0
      %573 = vmatprep.subr.mxu0 0.0
      %574 = vmatpush1.msra.mxu0 0.0
      %575 = vmatprep.subr.mxu0 0.0
      %576 = vmatpush1.msra.mxu0 0.0
      %577 = vmatprep.subr.mxu0 0.0
      %578 = vmatpush1.msra.mxu0 0.0
      %579 = vmatprep.subr.mxu0 0.0
      %580 = vmatpush1.msra.mxu0 0.0
      %581 = vmatprep.subr.mxu0 0.0
      %582 = vmatpush1.msra.mxu0 0.0
      %583 = vmatprep.subr.mxu0 0.0
      %584 = vmatpush1.msra.mxu0 0.0
      %585 = vmatprep.subr.mxu0 0.0
      %586 = vmatpush1.msra.mxu0 0.0
      %587 = vmatprep.subr.mxu0 0.0
      %588 = vmatpush1.msra.mxu0 0.0
      %589 = vmatprep.mubr.f32.mxu0 0.0
      %590 = vmatmul.mubr.f32.gmra.mrb[0].mxu0 %v514
      %v591 = vpop.f32.mrb[0].mxu0
      %v592 = vadd.f32 0.0, %v591
      %v593 = vpop.f32.mrb[0].mxu0
      %594 = vmatprep.mubr.f32.mxu0 0.0
      %595 = vmatmul.mubr.f32.gmra.mrb[0].mxu0 %v517
      %v596 = vpop.f32.mrb[0].mxu0
      %v597 = vadd.f32 0.0, %v596
      %v598 = vpop.f32.mrb[0].mxu0
      %599 = vmatprep.mubr.f32.mxu0 0.0
      %600 = vmatmul.mubr.f32.gmra.mrb[0].mxu0 %v520
      %v601 = vpop.f32.mrb[0].mxu0
      %v602 = vadd.f32 0.0, %v601
      %v603 = vpop.f32.mrb[0].mxu0
      %604 = vmatprep.mubr.f32.mxu0 0.0
      %605 = vmatmul.mubr.f32.gmra.mrb[0].mxu0 %v523
      %v606 = vpop.f32.mrb[0].mxu0
      %v607 = vadd.f32 0.0, %v606
      %v608 = vpop.f32.mrb[0].mxu0
      %609 = vdwg.mxu0
      %v610 = vadd.f32 %v502, %v592
      %v611 = vadd.f32 %v503, %v597
      %v612 = vadd.f32 %v504, %v602
      %v613 = vadd.f32 %v505, %v607
      %614 = vst.msk [vmem:[%s501] sm:$0xff] %vm379, %v610
      %615 = vst.msk [vmem:[%s501 + $0x8] sm:$0xff] %vm379, %v611
      %616 = vst.msk [vmem:[%s501 + $0x10] sm:$0xff] %vm379, %v612
      %617 = vst.msk [vmem:[%s501 + $0x18] sm:$0xff] %vm379, %v613
      // Predicated region
      $region37: #{downsample3d_forward.1} parent=31 // pred_check
        %p618 = pneg %p250
      $region38: #{downsample3d_forward.1} parent=31 // pred_check_branch
        %620 = sbr.rel (%p618) target = $region40
      $region39: #{downsample3d_forward.1} parent=31 // pred_region
        %v621 = vld [vmem:[#allocation2] sm:$0xff]
        %v622 = vld [vmem:[#allocation2 + $0x8] sm:$0xff]
        %v623 = vld [vmem:[#allocation2 + $0x10] sm:$0xff]
        %v624 = vld [vmem:[#allocation2 + $0x18] sm:$0xff]
        %v625 = vld [vmem:[#allocation2 + $0x20] sm:$0xff]
        %v626 = vld [vmem:[#allocation2 + $0x28] sm:$0xff]
        %v627 = vld [vmem:[#allocation2 + $0x30] sm:$0xff]
        %v628 = vld [vmem:[#allocation2 + $0x38] sm:$0xff]
        %v629 = vld [vmem:[#allocation2 + $0x40] sm:$0xff]
        %v630 = vld [vmem:[#allocation2 + $0x48] sm:$0xff]
        %v631 = vld [vmem:[#allocation2 + $0x50] sm:$0xff]
        %v632 = vld [vmem:[#allocation2 + $0x58] sm:$0xff]
        %v633 = vld [vmem:[%s2] sm:$0xff]
        %v634 = vld [vmem:[%s2 + $0x8] sm:$0xff]
        %v635 = vld [vmem:[%s2 + $0x10] sm:$0xff]
        %v636 = vld [vmem:[%s2 + $0x18] sm:$0xff]
        %638 = vset.pattern.permute.xlu0 0
        %639 = vperm.xlu0 %638, %v633
        %v640 = vpop.permute.xlu0 %639
        %643 = vset.pattern.permute.xlu0 0
        %644 = vperm.xlu0 %643, %v634
        %v645 = vpop.permute.xlu0 %644
        %648 = vset.pattern.permute.xlu0 0
        %649 = vperm.xlu0 %648, %v635
        %v650 = vpop.permute.xlu0 %649
        %653 = vset.pattern.permute.xlu0 0
        %654 = vperm.xlu0 %653, %v636
        %v655 = vpop.permute.xlu0 %654
        %v657 = vadd.f32 %v621, %v640
        %v658 = vadd.f32 %v622, %v645
        %v659 = vadd.f32 %v623, %v650
        %v660 = vadd.f32 %v624, %v655
        %v661 = vadd.f32 %v625, %v640
        %v662 = vadd.f32 %v626, %v645
        %v663 = vadd.f32 %v627, %v650
        %v664 = vadd.f32 %v628, %v655
        %v665 = vadd.f32 %v629, %v640
        %v666 = vadd.f32 %v630, %v645
        %v667 = vadd.f32 %v631, %v650
        %v668 = vadd.f32 %v632, %v655
        %669 = vst.msk [vmem:[%s248] sm:$0xff] %vm379, %v657
        %670 = vst.msk [vmem:[%s248 + $0x8] sm:$0xff] %vm379, %v658
        %671 = vst.msk [vmem:[%s248 + $0x10] sm:$0xff] %vm379, %v659
        %672 = vst.msk [vmem:[%s248 + $0x18] sm:$0xff] %vm379, %v660
        %673 = vst.msk [vmem:[%s248 + $0x20] sm:$0xff] %vm379, %v661
        %674 = vst.msk [vmem:[%s248 + $0x28] sm:$0xff] %vm379, %v662
        %675 = vst.msk [vmem:[%s248 + $0x30] sm:$0xff] %vm379, %v663
        %676 = vst.msk [vmem:[%s248 + $0x38] sm:$0xff] %vm379, %v664
        %677 = vst.msk [vmem:[%s248 + $0x40] sm:$0xff] %vm379, %v665
        %678 = vst.msk [vmem:[%s248 + $0x48] sm:$0xff] %vm379, %v666
        %679 = vst.msk [vmem:[%s248 + $0x50] sm:$0xff] %vm379, %v667
        %680 = vst.msk [vmem:[%s248 + $0x58] sm:$0xff] %vm379, %v668
      $region40: #{downsample3d_forward.1} parent=31 // pred_fallthru
        _
      %s681 = smul.u32 3, %s19
      %p682 = scmp.lt.s32.totalorder %s681, 5
      %s683 = scalar_select %p682, %s681, 5
      %p684 = scmp.lt.s32.totalorder %s20, 0
      %s685 = scalar_select %p684, %s20, 0
      %s686 = smul.addr %s683, 4
      %s687 = sadd.s32 %s685, %s686
      %s688 = smul.addr %s687, 8
      %s689 = scalar_lea.vmem %s3, %s688
      // Predicated region
      $region41: #{downsample3d_forward.1} parent=31 // pred_check
        %p690 = pneg %p130
      $region42: #{downsample3d_forward.1} parent=31 // pred_check_branch
        %692 = sbr.rel (%p690) target = $region44
      $region43: #{downsample3d_forward.1} parent=31 // pred_region
        %s693 = smul.u32 3, %s19
      $region44: #{downsample3d_forward.1} parent=31 // pred_fallthru
        _
    $region32: #{downsample3d_forward.1} parent=5 // pred_fallthru
      _
    %p694 = scmp.le.s32.totalorder 2, %s9
    // Predicated region
    $region45: #{downsample3d_forward.1} parent=5 // pred_check
      %p695 = pneg %p694
    $region46: #{downsample3d_forward.1} parent=5 // pred_check_branch
      %697 = sbr.rel (%p695) target = $region48
    $region47: #{downsample3d_forward.1} parent=5 // pred_region
      %s698 = ssub.s32 %s9, 2
      // Predicated region
      $region49: #{downsample3d_forward.1} parent=47 // pred_check
        %p699 = pneg %p136
      $region50: #{downsample3d_forward.1} parent=47 // pred_check_branch
        %701 = sbr.rel (%p699) target = $region52
      $region51: #{downsample3d_forward.1} parent=47 // pred_region
        %s702 = smul.u32 3, %s22
        %p703 = scmp.lt.s32.totalorder %s702, 5
        %s704 = scalar_select %p703, %s702, 5
        %p705 = scmp.lt.s32.totalorder %s23, 0
        %s706 = scalar_select %p705, %s23, 0
        %s707 = smul.addr %s704, 4
        %s708 = sadd.s32 %s706, %s707
        %s709 = smul.addr %s708, 8
        %s710 = scalar_lea.vmem %s3, %s709
      $region52: #{downsample3d_forward.1} parent=47 // pred_fallthru
        _
    $region48: #{downsample3d_forward.1} parent=5 // pred_fallthru
      _
  $region6: #{downsample3d_forward.1} parent=0 // loop_footer
    %s13 = sadd.s32 1, %s9
  $region7: #{downsample3d_forward.1} parent=0 // loop_footer_branch
    %8 = sbr.rel target = $region3
  $region8: #{downsample3d_forward.1} parent=0 // loop_exit
    _

</llo_original>
